<compile_context>
chip_gen: v7x
topology: tpu7x:2x2x1
jax: 0.10.0
libtpu: 0.0.40
codegen_flags: <defaults>
</compile_context>

<pallas_src>
import jax
import jax.numpy as jnp
from jax.experimental import pallas as pl
from jax.experimental.pallas import tpu as pltpu


_LANE = 128  # per-head lane padding -> unmasked, lane-dense vst stores


def _round_up(x, m):
    return (x + m - 1) // m * m


def _fused_head_kernel(x_ref, w_ref, b_cls_ref, b_bbox_ref,
                       cls_out_ref, bbox_out_ref):
    """One RoI tile: (TN, C) @ (C, NCP+NBP) -> two lane-dense output blocks."""
    ncp = cls_out_ref.shape[-1]
    # In-kernel cast to the compute dtype (no extra HBM pass in the wrapper).
    x = x_ref[...].astype(w_ref.dtype)
    acc = jnp.dot(x, w_ref[...], preferred_element_type=jnp.float32)
    # ncp is a multiple of 128, so both slices are lane-aligned (no xlane copy).
    cls_out_ref[...] = (acc[:, :ncp] + b_cls_ref[...]).astype(cls_out_ref.dtype)
    bbox_out_ref[...] = (acc[:, ncp:] + b_bbox_ref[...]).astype(bbox_out_ref.dtype)


def prepare_fastrcnn_params(w_cls, b_cls, w_bbox, b_bbox,
                            compute_dtype=jnp.bfloat16):
    """One-time parameter preparation (do NOT call per forward pass).

    w_cls:  (num_classes, C)     PyTorch nn.Linear weight layout
    b_cls:  (num_classes,)
    w_bbox: (num_classes*4, C)
    b_bbox: (num_classes*4,)
    """
    nc, c = w_cls.shape
    nb, c2 = w_bbox.shape
    assert c == c2, "cls_score / bbox_pred in_channels mismatch"
    ncp = _round_up(nc, _LANE)
    nbp = _round_up(nb, _LANE)

    # Transpose to (C, out), pad EACH head to a lane multiple, then fuse.
    wc = jnp.pad(jnp.asarray(w_cls, jnp.float32).T, ((0, 0), (0, ncp - nc)))
    wb = jnp.pad(jnp.asarray(w_bbox, jnp.float32).T, ((0, 0), (0, nbp - nb)))
    w_fused = jnp.concatenate([wc, wb], axis=1)               # (C, ncp+nbp)

    b_cls_p = jnp.pad(jnp.asarray(b_cls, jnp.float32), (0, ncp - nc))
    b_bbox_p = jnp.pad(jnp.asarray(b_bbox, jnp.float32), (0, nbp - nb))

    return dict(
        w=w_fused.astype(compute_dtype),       # (C, ncp+nbp) compute dtype
        b_cls=b_cls_p.reshape(1, ncp),         # (1, ncp) f32
        b_bbox=b_bbox_p.reshape(1, nbp),       # (1, nbp) f32
        nc=nc, nb=nb, ncp=ncp, nbp=nbp, c=c,
        compute_dtype=compute_dtype,
    )


def fastrcnn_predictor(x, params, *, tile_n=1024, out_dtype=jnp.float32):
    """Forward pass.  x: (N, C) or (N, C, 1, 1).  Returns (scores, bbox_deltas).

    out_dtype=jnp.bfloat16 halves the output HBM stream (worth ~20-30% on this
    memory-bound op) if the downstream consumers tolerate it; f32 is default.
    """
    if x.ndim == 4:
        assert x.shape[2] == 1 and x.shape[3] == 1, "expected (N, C, 1, 1)"
        x = x.reshape(x.shape[0], x.shape[1])
    n, c = x.shape
    assert c == params["c"]
    nc, nb = params["nc"], params["nb"]
    ncp, nbp = params["ncp"], params["nbp"]
    out_p = ncp + nbp

    # Guard: zero surviving proposals (avoids a zero-size grid / div-by-zero).
    if n == 0:
        return (jnp.zeros((0, nc), out_dtype), jnp.zeros((0, nb), out_dtype))

    # RoI-axis tile: multiple of 8 sublanes, capped at tile_n rows per step.
    # When the whole problem fits in <= 2 tiles, split it into 2 balanced
    # steps so the "parallel" axis feeds both v7x TensorCores (harmless on
    # v5e/v6e).  VMEM at tn=1024, C~1024 is only ~10 MB with double buffering,
    # well under the default scoped limit on all generations.
    if n <= 2 * tile_n:
        tn = max(8, _round_up(pl.cdiv(n, 2), 8))
    else:
        tn = tile_n
    tn = min(tn, _round_up(n, 8))
    grid = (pl.cdiv(n, tn),)

    # Advisory cost hint so XLA schedules this small call sensibly relative to
    # surrounding detection-head work.
    bytes_accessed = (
        n * c * x.dtype.itemsize
        + params["w"].size * params["w"].dtype.itemsize
        + (ncp + nbp) * 4
        + n * out_p * jnp.dtype(out_dtype).itemsize
    )
    cost = pl.CostEstimate(flops=2 * n * c * out_p,
                           transcendentals=0,
                           bytes_accessed=bytes_accessed)

    # NOTE: the fused weight/bias blocks are grid-invariant; default double
    # buffering wastes ~1 MB at C=1024, but VMEM has ample headroom here so we
    # keep the default pipeline mode for maximum portability.
    out_cls, out_bbox = pl.pallas_call(
        _fused_head_kernel,
        out_shape=(jax.ShapeDtypeStruct((n, ncp), out_dtype),
                   jax.ShapeDtypeStruct((n, nbp), out_dtype)),
        grid=grid,
        in_specs=[
            pl.BlockSpec((tn, c), lambda i: (i, 0)),       # x tile (pipelined)
            pl.BlockSpec((c, out_p), lambda i: (0, 0)),    # fused weight (resident)
            pl.BlockSpec((1, ncp), lambda i: (0, 0)),      # cls bias (resident)
            pl.BlockSpec((1, nbp), lambda i: (0, 0)),      # bbox bias (resident)
        ],
        out_specs=(
            pl.BlockSpec((tn, ncp), lambda i: (i, 0)),     # scores (lane-dense)
            pl.BlockSpec((tn, nbp), lambda i: (i, 0)),     # bbox   (lane-dense)
        ),
        compiler_params=pltpu.CompilerParams(
            dimension_semantics=("parallel",),  # shard N across TCs on v7x
        ),
        cost_estimate=cost,
    )(x, params["w"], params["b_cls"], params["b_bbox"])

    # Lane-0-based truncations (drop trailing pad) -> fuse into downstream ops.
    scores = out_cls[:, :nc]
    bbox_deltas = out_bbox[:, :nb]
    return scores, bbox_deltas


if __name__ == "__main__":
    key = jax.random.PRNGKey(0)
    N, C, NUM_CLASSES = 8, 32, 5

    k1, k2, k3, k4, k5, k6 = jax.random.split(key, 6)
    # Deterministic synthetic parameters (PyTorch nn.Linear shapes).
    w_cls = jax.random.normal(k1, (NUM_CLASSES, C), jnp.float32) * 0.02
    b_cls = jax.random.normal(k2, (NUM_CLASSES,), jnp.float32) * 0.01
    w_bbox = jax.random.normal(k3, (NUM_CLASSES * 4, C), jnp.float32) * 0.02
    b_bbox = jax.random.normal(k4, (NUM_CLASSES * 4,), jnp.float32) * 0.01

    # Input as it would come from RoI pooling: (N, C, 1, 1) NCHW, float32.
    x = jax.random.normal(k5, (N, C, 1, 1), jnp.float32)

    # Reference in plain JAX (f32).
    xf = x.reshape(N, C)
    ref_scores = xf @ w_cls.T + b_cls
    ref_bbox = xf @ w_bbox.T + b_bbox

    # --- f32 compute path: tight tolerance -------------------------------
    params_f32 = prepare_fastrcnn_params(w_cls, b_cls, w_bbox, b_bbox,
                                         compute_dtype=jnp.float32)
    scores32, bbox32 = fastrcnn_predictor(x, params_f32)
    jax.block_until_ready((scores32, bbox32))
    assert scores32.shape == (N, NUM_CLASSES)
    assert bbox32.shape == (N, NUM_CLASSES * 4)
    assert jnp.allclose(scores32, ref_scores, atol=1e-5)
    assert jnp.allclose(bbox32, ref_bbox, atol=1e-5)

    # --- bf16 compute path (production default): loose tolerance ---------
    params_bf16 = prepare_fastrcnn_params(w_cls, b_cls, w_bbox, b_bbox,
                                          compute_dtype=jnp.bfloat16)
    scores, bbox_deltas = fastrcnn_predictor(x, params_bf16)
    jax.block_until_ready((scores, bbox_deltas))
    assert scores.shape == (N, NUM_CLASSES)
    assert bbox_deltas.shape == (N, NUM_CLASSES * 4)
    assert jnp.allclose(scores, ref_scores, atol=2e-2)
    assert jnp.allclose(bbox_deltas, ref_bbox, atol=2e-2)

    # --- multi-step grid + partial final tile (N not a multiple of 8) ----
    N2 = 20
    x2 = jax.random.normal(k6, (N2, C), jnp.float32)
    ref_s2 = x2 @ w_cls.T + b_cls
    ref_b2 = x2 @ w_bbox.T + b_bbox
    s2, bd2 = fastrcnn_predictor(x2, params_f32)
    jax.block_until_ready((s2, bd2))
    assert s2.shape == (N2, NUM_CLASSES) and bd2.shape == (N2, NUM_CLASSES * 4)
    assert jnp.allclose(s2, ref_s2, atol=1e-5)
    assert jnp.allclose(bd2, ref_b2, atol=1e-5)

    # --- zero-RoI guard ----------------------------------------------------
    s0, b0 = fastrcnn_predictor(jnp.zeros((0, C), jnp.float32), params_f32)
    assert s0.shape == (0, NUM_CLASSES) and b0.shape == (0, NUM_CLASSES * 4)

    print("KERNEL_OK")
</pallas_src>

<mosaic_0001>
module attributes {stable_mosaic.version = 11 : i64} {
  func.func @_fused_head_kernel(%arg0: i32, %arg1: memref<8x32xf32, #tpu.memory_space<vmem>>, %arg2: memref<32x256xf32, #tpu.memory_space<vmem>>, %arg3: memref<1x128xf32, #tpu.memory_space<vmem>>, %arg4: memref<1x128xf32, #tpu.memory_space<vmem>>, %arg5: memref<8x128xf32, #tpu.memory_space<vmem>>, %arg6: memref<8x128xf32, #tpu.memory_space<vmem>>) attributes {dimension_semantics = [#tpu.dimension_semantics<parallel>], iteration_bounds = array<i64: 1>, scalar_prefetch = 0 : i64, scratch_operands = 0 : i64, tpu.core_type = #tpu.core_type<tc>, window_params = [{transform_indices = @transform_0, window_bounds = array<i64: 8, 32>}, {pipeline_mode = #tpu.pipeline_mode<synchronous>, transform_indices = @transform_1, window_bounds = array<i64: 32, 256>}, {pipeline_mode = #tpu.pipeline_mode<synchronous>, transform_indices = @transform_2, window_bounds = array<i64: 1, 128>}, {pipeline_mode = #tpu.pipeline_mode<synchronous>, transform_indices = @transform_3, window_bounds = array<i64: 1, 128>}, {transform_indices = @transform_4, window_bounds = array<i64: 8, 128>}, {transform_indices = @transform_5, window_bounds = array<i64: 8, 128>}]} {
    %c0 = arith.constant 0 : index
    %c0_0 = arith.constant 0 : index
    %0 = vector.load %arg1[%c0, %c0_0] : memref<8x32xf32, #tpu.memory_space<vmem>>, vector<8x32xf32>
    %c0_1 = arith.constant 0 : index
    %c0_2 = arith.constant 0 : index
    %1 = vector.load %arg2[%c0_1, %c0_2] : memref<32x256xf32, #tpu.memory_space<vmem>>, vector<32x256xf32>
    %cst = arith.constant dense<0.000000e+00> : vector<8x256xf32>
    %2 = tpu.matmul %0, %1, %cst {dimension_numbers = #tpu.dot_dimension_numbers<[1], [0], [0], [1], [0, 0, 1, 1], [], []>} : vector<8x32xf32>, vector<32x256xf32>, vector<8x256xf32> -> vector<8x256xf32>
    %3 = vector.extract_strided_slice %2 {offsets = [0, 0], sizes = [8, 128], strides = [1, 1]} : vector<8x256xf32> to vector<8x128xf32>
    %c0_3 = arith.constant 0 : index
    %c0_4 = arith.constant 0 : index
    %4 = vector.load %arg3[%c0_3, %c0_4] : memref<1x128xf32, #tpu.memory_space<vmem>>, vector<1x128xf32>
    %5 = vector.broadcast %4 : vector<1x128xf32> to vector<8x128xf32>
    %6 = arith.addf %3, %5 : vector<8x128xf32>
    %c0_5 = arith.constant 0 : index
    %c0_6 = arith.constant 0 : index
    %7 = vector.load %arg5[%c0_5, %c0_6] : memref<8x128xf32, #tpu.memory_space<vmem>>, vector<8x128xf32>
    tpu.vector_store %arg5[%c0_5, %c0_6], %6 {strides = array<i32>} : memref<8x128xf32, #tpu.memory_space<vmem>>, vector<8x128xf32>,
    %8 = vector.extract_strided_slice %2 {offsets = [0, 128], sizes = [8, 128], strides = [1, 1]} : vector<8x256xf32> to vector<8x128xf32>
    %c0_7 = arith.constant 0 : index
    %c0_8 = arith.constant 0 : index
    %9 = vector.load %arg4[%c0_7, %c0_8] : memref<1x128xf32, #tpu.memory_space<vmem>>, vector<1x128xf32>
    %10 = vector.broadcast %9 : vector<1x128xf32> to vector<8x128xf32>
    %11 = arith.addf %8, %10 : vector<8x128xf32>
    %c0_9 = arith.constant 0 : index
    %c0_10 = arith.constant 0 : index
    %12 = vector.load %arg6[%c0_9, %c0_10] : memref<8x128xf32, #tpu.memory_space<vmem>>, vector<8x128xf32>
    tpu.vector_store %arg6[%c0_9, %c0_10], %11 {strides = array<i32>} : memref<8x128xf32, #tpu.memory_space<vmem>>, vector<8x128xf32>,
    return
  }
  func.func @transform_0(%arg0: i32) -> (i32, i32) {
    %c0_i32 = arith.constant 0 : i32
    %c0_i32_0 = arith.constant 0 : i32
    return %arg0, %c0_i32 : i32, i32
  }
  func.func @transform_1(%arg0: i32) -> (i32, i32) {
    %c0_i32 = arith.constant 0 : i32
    %c0_i32_0 = arith.constant 0 : i32
    %c0_i32_1 = arith.constant 0 : i32
    return %c0_i32, %c0_i32_0 : i32, i32
  }
  func.func @transform_2(%arg0: i32) -> (i32, i32) {
    %c0_i32 = arith.constant 0 : i32
    %c0_i32_0 = arith.constant 0 : i32
    %c0_i32_1 = arith.constant 0 : i32
    return %c0_i32, %c0_i32_0 : i32, i32
  }
  func.func @transform_3(%arg0: i32) -> (i32, i32) {
    %c0_i32 = arith.constant 0 : i32
    %c0_i32_0 = arith.constant 0 : i32
    %c0_i32_1 = arith.constant 0 : i32
    return %c0_i32, %c0_i32_0 : i32, i32
  }
  func.func @transform_4(%arg0: i32) -> (i32, i32) {
    %c0_i32 = arith.constant 0 : i32
    %c0_i32_0 = arith.constant 0 : i32
    return %arg0, %c0_i32 : i32, i32
  }
  func.func @transform_5(%arg0: i32) -> (i32, i32) {
    %c0_i32 = arith.constant 0 : i32
    %c0_i32_0 = arith.constant 0 : i32
    return %arg0, %c0_i32 : i32, i32
  }
}

</mosaic_0001>

<llo_original>
// kernel: tpu_custom_call.1
$region0: #{tpu_custom_call.1}
  #allocation0 [shape = 'u32[]', space=smem, size = 0x4, offset = 0x4, fixed_abs, tag = 'smem constant byte address 0x4 - core index']
  #allocation1 [shape = 'u32[144,128]{1,0:T(1,128)}', space=vmem, size = 0x12000, scoped, tag = 'internal scratch']
  %s0 = inlined_call_operand.hbm [shape: f32[8,32], index: 0, kind: input, shape index: {}]
  %s1 = inlined_call_operand.hbm [shape: f32[32,256], index: 1, kind: input, shape index: {}]
  %s2 = inlined_call_operand.vmem [shape: f32[1,128], index: 2, kind: input, shape index: {}]
  %s3 = inlined_call_operand.vmem [shape: f32[1,128], index: 3, kind: input, shape index: {}]
  %s4 = inlined_call_operand.hbm [shape: f32[8,128], index: 4, kind: output, shape index: {0}]
  %s5 = inlined_call_operand.hbm [shape: f32[8,128], index: 5, kind: output, shape index: {1}]
  %6 = xla_tuple %s4, %s5
  %s7 = sld [smem:[#allocation0]]
  $region42: #{tpu_custom_call.1} parent=0
    _
  %s9 = ssub.s32 1, %s7
  %s10 = scalar_select 0, %s9, %s7
  $region1: #{tpu_custom_call.1} parent=0
    #allocation2 [shape = 'u8[4096]{0}', space=vmem, size = 0x1000, scoped, tag = 'input window, operand 0, single buffered']
    #allocation3 [shape = 's32[1]{0}', space=sflag, size = 0x4, scoped, tag = 'scoped memory for tpu_custom_call.1']
    #allocation4 [shape = 's32[1]{0}', space=sflag, size = 0x4, scoped, tag = 'scoped memory for tpu_custom_call.1']
    #allocation5 [shape = 'u8[32768]{0}', space=vmem, size = 0x8000, scoped, tag = 'input window, operand 1, single buffered']
    #allocation6 [shape = 's32[1]{0}', space=sflag, size = 0x4, scoped, tag = 'scoped memory for tpu_custom_call.1']
    #allocation7 [shape = 'u8[4096]{0}', space=vmem, size = 0x1000, scoped, tag = 'output window, operand 0, single buffered']
    #allocation8 [shape = 'u8[4096]{0}', space=vmem, size = 0x1000, scoped, tag = 'output window, operand 1, single buffered']
    #allocation9 [shape = 's32[1]{0}', space=sflag, size = 0x4, scoped, tag = 'scoped memory for tpu_custom_call.1']
    %11 = vsyncpa [#allocation3], 0
    %12 = vsyncpa [#allocation6], 0
    %13 = vsyncpa [#allocation4], 0
    %14 = vsyncpa [#allocation9], 0
    // Predicated region
    $region2: #{tpu_custom_call.1} parent=1 // pred_check
      _
    $region3: #{tpu_custom_call.1} parent=1 // pred_check_branch
      %16 = sbr.rel (0) target = $region5
    $region4: #{tpu_custom_call.1} parent=1 // pred_region
      %s18 = ssub.s32 128, 128
      %19 = vsyncadd [#allocation3], %s18
      %s21 = sshll.u32 [#allocation2], 4
      %s22 = int_to_ptr.vmem [resolvable:$true] %s21
      %24 = dma.hbm_to_vmem [thread:$0]  %s0, 128, %s22, [#allocation3]
    $region5: #{tpu_custom_call.1} parent=1 // pred_fallthru
      _
    // Predicated region
    $region6: #{tpu_custom_call.1} parent=1 // pred_check
      _
    $region7: #{tpu_custom_call.1} parent=1 // pred_check_branch
      %26 = sbr.rel (0) target = $region9
    $region8: #{tpu_custom_call.1} parent=1 // pred_region
      %s28 = ssub.s32 1024, 1024
      %29 = vsyncadd [#allocation6], %s28
      %s30 = sshll.u32 [#allocation5], 4
      %s31 = int_to_ptr.vmem [resolvable:$true] %s30
      %36 = dma.hbm_to_vmem [thread:$0]  %s1, 1024, %s31, [#allocation6], 256, 256, 16
    $region9: #{tpu_custom_call.1} parent=1 // pred_fallthru
      _
    // Predicated region
    $region10: #{tpu_custom_call.1} parent=1 // pred_check
      _
    $region11: #{tpu_custom_call.1} parent=1 // pred_check_branch
      %38 = sbr.rel (0) target = $region13
    $region12: #{tpu_custom_call.1} parent=1 // pred_region
      _
    $region13: #{tpu_custom_call.1} parent=1 // pred_fallthru
      _
    // Predicated region
    $region14: #{tpu_custom_call.1} parent=1 // pred_check
      _
    $region15: #{tpu_custom_call.1} parent=1 // pred_check_branch
      %40 = sbr.rel (0) target = $region17
    $region16: #{tpu_custom_call.1} parent=1 // pred_region
      _
    $region17: #{tpu_custom_call.1} parent=1 // pred_fallthru
      _
    // Predicated region
    $region18: #{tpu_custom_call.1} parent=1 // pred_check
      _
    $region19: #{tpu_custom_call.1} parent=1 // pred_check_branch
      %42 = sbr.rel (0) target = $region21
    $region20: #{tpu_custom_call.1} parent=1 // pred_region
      %43 = dma.done [#allocation3], 128
    $region21: #{tpu_custom_call.1} parent=1 // pred_fallthru
      _
    // Predicated region
    $region22: #{tpu_custom_call.1} parent=1 // pred_check
      _
    $region23: #{tpu_custom_call.1} parent=1 // pred_check_branch
      %45 = sbr.rel (0) target = $region25
    $region24: #{tpu_custom_call.1} parent=1 // pred_region
      %46 = dma.done [#allocation6], 1024
    $region25: #{tpu_custom_call.1} parent=1 // pred_fallthru
      _
    %v47 = vld [vmem:[#allocation2] sm:$0xff]
    %v48 = vld [vmem:[#allocation5] sm:$0xff]
    %v49 = vld [vmem:[#allocation5 + $0x8] sm:$0xff]
    %v50 = vld [vmem:[#allocation5 + $0x10] sm:$0xff]
    %v51 = vld [vmem:[#allocation5 + $0x18] sm:$0xff]
    %v52 = vld [vmem:[#allocation5 + $0x20] sm:$0xff]
    %v53 = vld [vmem:[#allocation5 + $0x28] sm:$0xff]
    %v54 = vld [vmem:[#allocation5 + $0x30] sm:$0xff]
    %v55 = vld [vmem:[#allocation5 + $0x38] sm:$0xff]
    %vm56 = vcmask 261120
    %v58 = vsel %vm56, %v47, 0
    %60 = vmatprep.subr.mxu0 %v49
    %61 = vmatpush1.msra.mxu0 %v48
    %62 = vmatprep.subr.mxu0 %v51
    %63 = vmatpush1.msra.mxu0 %v50
    %64 = vmatprep.subr.mxu0 %v53
    %65 = vmatpush1.msra.mxu0 %v52
    %66 = vmatprep.subr.mxu0 %v55
    %67 = vmatpush1.msra.mxu0 %v54
    %68 = vmatprep.subr.mxu0 0.0
    %69 = vmatpush1.msra.mxu0 0.0
    %70 = vmatprep.subr.mxu0 0.0
    %71 = vmatpush1.msra.mxu0 0.0
    %72 = vmatprep.subr.mxu0 0.0
    %73 = vmatpush1.msra.mxu0 0.0
    %74 = vmatprep.subr.mxu0 0.0
    %75 = vmatpush1.msra.mxu0 0.0
    %76 = vmatprep.subr.mxu0 0.0
    %77 = vmatpush1.msra.mxu0 0.0
    %78 = vmatprep.subr.mxu0 0.0
    %79 = vmatpush1.msra.mxu0 0.0
    %80 = vmatprep.subr.mxu0 0.0
    %81 = vmatpush1.msra.mxu0 0.0
    %82 = vmatprep.subr.mxu0 0.0
    %83 = vmatpush1.msra.mxu0 0.0
    %84 = vmatprep.subr.mxu0 0.0
    %85 = vmatpush1.msra.mxu0 0.0
    %86 = vmatprep.subr.mxu0 0.0
    %87 = vmatpush1.msra.mxu0 0.0
    %88 = vmatprep.subr.mxu0 0.0
    %89 = vmatpush1.msra.mxu0 0.0
    %90 = vmatprep.subr.mxu0 0.0
    %91 = vmatpush1.msra.mxu0 0.0
    %92 = vmatprep.subr.mxu0 0.0
    %93 = vmatpush1.msra.mxu0 0.0
    %94 = vmatprep.subr.mxu0 0.0
    %95 = vmatpush1.msra.mxu0 0.0
    %96 = vmatprep.subr.mxu0 0.0
    %97 = vmatpush1.msra.mxu0 0.0
    %98 = vmatprep.subr.mxu0 0.0
    %99 = vmatpush1.msra.mxu0 0.0
    %100 = vmatprep.subr.mxu0 0.0
    %101 = vmatpush1.msra.mxu0 0.0
    %102 = vmatprep.subr.mxu0 0.0
    %103 = vmatpush1.msra.mxu0 0.0
    %104 = vmatprep.subr.mxu0 0.0
    %105 = vmatpush1.msra.mxu0 0.0
    %106 = vmatprep.subr.mxu0 0.0
    %107 = vmatpush1.msra.mxu0 0.0
    %108 = vmatprep.subr.mxu0 0.0
    %109 = vmatpush1.msra.mxu0 0.0
    %110 = vmatprep.subr.mxu0 0.0
    %111 = vmatpush1.msra.mxu0 0.0
    %112 = vmatprep.subr.mxu0 0.0
    %113 = vmatpush1.msra.mxu0 0.0
    %114 = vmatprep.subr.mxu0 0.0
    %115 = vmatpush1.msra.mxu0 0.0
    %116 = vmatprep.subr.mxu0 0.0
    %117 = vmatpush1.msra.mxu0 0.0
    %118 = vmatprep.subr.mxu0 0.0
    %119 = vmatpush1.msra.mxu0 0.0
    %120 = vmatprep.subr.mxu0 0.0
    %121 = vmatpush1.msra.mxu0 0.0
    %122 = vmatprep.subr.mxu0 0.0
    %123 = vmatpush1.msra.mxu0 0.0
    %124 = vmatprep.mubr.f32.mxu0 0.0
    %125 = vmatmul.mubr.f32.gmra.mrb[0].mxu0 %v58
    %v126 = vpop.f32.mrb[0].mxu0
    %v127 = vadd.f32 0.0, %v126
    %v128 = vpop.f32.mrb[0].mxu0
    %v129 = vadd.f32 0.0, %v128
    %130 = vdwg.mxu0
    %v131 = vld [vmem:[%s2] sm:$0x1]
    %v133 = vlaneseq
    %v134 = vshrl.u32 %v133, 7
    %v135 = vsub.s32 0, %v134
    %v136 = vrot.slane %v131, %v135
    %v138 = vadd.f32 %v127, %v136
    %139 = vst [vmem:[#allocation7] sm:$0xff] %v138
    %v140 = vld [vmem:[%s3] sm:$0x1]
    %v142 = vlaneseq
    %v143 = vshrl.u32 %v142, 7
    %v144 = vsub.s32 0, %v143
    %v145 = vrot.slane %v140, %v144
    %v147 = vadd.f32 %v129, %v145
    %148 = vst [vmem:[#allocation8] sm:$0xff] %v147
    // Predicated region
    $region26: #{tpu_custom_call.1} parent=1 // pred_check
      _
    $region27: #{tpu_custom_call.1} parent=1 // pred_check_branch
      %150 = sbr.rel (0) target = $region29
    $region28: #{tpu_custom_call.1} parent=1 // pred_region
      %s152 = ssub.s32 128, 128
      %153 = vsyncadd [#allocation4], %s152
      %s155 = sshll.u32 [#allocation7], 4
      %s156 = int_to_ptr.vmem [resolvable:$true] %s155
      %158 = dma.vmem_to_hbm [thread:$0]  %s156, 128, %s4, [#allocation4]
    $region29: #{tpu_custom_call.1} parent=1 // pred_fallthru
      _
    // Predicated region
    $region30: #{tpu_custom_call.1} parent=1 // pred_check
      _
    $region31: #{tpu_custom_call.1} parent=1 // pred_check_branch
      %160 = sbr.rel (0) target = $region33
    $region32: #{tpu_custom_call.1} parent=1 // pred_region
      %s162 = ssub.s32 128, 128
      %163 = vsyncadd [#allocation9], %s162
      %s165 = sshll.u32 [#allocation8], 4
      %s166 = int_to_ptr.vmem [resolvable:$true] %s165
      %168 = dma.vmem_to_hbm [thread:$0]  %s166, 128, %s5, [#allocation9]
    $region33: #{tpu_custom_call.1} parent=1 // pred_fallthru
      _
    // Predicated region
    $region34: #{tpu_custom_call.1} parent=1 // pred_check
      _
    $region35: #{tpu_custom_call.1} parent=1 // pred_check_branch
      %170 = sbr.rel (0) target = $region37
    $region36: #{tpu_custom_call.1} parent=1 // pred_region
      %171 = dma.done [#allocation4], 128
    $region37: #{tpu_custom_call.1} parent=1 // pred_fallthru
      _
    // Predicated region
    $region38: #{tpu_custom_call.1} parent=1 // pred_check
      _
    $region39: #{tpu_custom_call.1} parent=1 // pred_check_branch
      %173 = sbr.rel (0) target = $region41
    $region40: #{tpu_custom_call.1} parent=1 // pred_region
      %174 = dma.done [#allocation9], 128
    $region41: #{tpu_custom_call.1} parent=1 // pred_fallthru
      _
    %175 = vsyncpa [#allocation3], 1
    %176 = vsyncpa [#allocation6], 1
    %177 = vsyncpa [#allocation4], 1
    %178 = vsyncpa [#allocation9], 1

</llo_original>
